<compile_context>
chip_gen: v7x
topology: tpu7x:2x2x1
jax: 0.10.0
libtpu: 0.0.40
codegen_flags: <defaults>
</compile_context>

<pallas_src>
import numpy as np
import jax
import jax.numpy as jnp
from jax.experimental import pallas as pl
from jax.experimental.pallas import tpu as pltpu


FOLD = 32  # original rows folded into one lane-dense row (FOLD * D must be a multiple of 128 here: 32*20=640)


# --------------------------------------------------------------------------- #
# irreps helpers (host-side numpy "glue": build tiny block-diagonal selectors)
# --------------------------------------------------------------------------- #
def irreps_dim(irreps):
    return sum(mul * (2 * l + 1) for mul, l in irreps)


def build_irreps_operators(irreps, fold=1):
    """Folded scalar mask (1, fold*D), group-sum (fold*D, fold*NG), group-bcast (fold*NG, fold*D)."""
    D = irreps_dim(irreps)
    NG = sum(mul for mul, l in irreps if l > 0)
    ng = max(NG, 1)

    smask = np.zeros((D,), np.float32)
    gsum = np.zeros((D, ng), np.float32)
    gbcast = np.zeros((ng, D), np.float32)
    col, g = 0, 0
    for mul, l in irreps:
        d = 2 * l + 1
        if l == 0:
            smask[col:col + mul] = 1.0
            col += mul
        else:
            for _ in range(mul):
                gsum[col:col + d, g] = 1.0
                gbcast[g, col:col + d] = 1.0
                col += d
                g += 1

    # block-diagonal replication: `fold` original rows share one folded (lane-dense) row
    smask_f = np.tile(smask, fold)[None, :]                    # (1, fold*D)
    gsum_f = np.kron(np.eye(fold, dtype=np.float32), gsum)    # (fold*D, fold*ng)
    gbcast_f = np.kron(np.eye(fold, dtype=np.float32), gbcast)  # (fold*ng, fold*D)
    return jnp.asarray(smask_f), jnp.asarray(gsum_f), jnp.asarray(gbcast_f)


def _round_up(x, m):
    return ((x + m - 1) // m) * m


# --------------------------------------------------------------------------- #
# Pallas kernel
# --------------------------------------------------------------------------- #
def make_safe_norm_activation_kernel(eps):
    def kernel(x_ref, smask_ref, gsum_ref, gbcast_ref, o_ref):
        x = x_ref[...]                                           # (TR, FOLD*D) f32
        # input NaN scrub (matches torch.where(torch.isnan(x), 0, x))
        x = jnp.where(jnp.isnan(x), jnp.zeros_like(x), x)

        # per-group squared norms via lane-dense selector matmul: (TR, FOLD*NG)
        nsq = jnp.dot(x * x, gsum_ref[...], preferred_element_type=jnp.float32)
        norm = jnp.sqrt(nsq)

        # exact simplification: v / max(norm, eps) * silu(norm) == v * sigmoid(norm)  (norm >= eps)
        sfac = jnp.where(norm < eps, jnp.zeros_like(norm), jax.nn.sigmoid(norm))

        # broadcast per-group factor back onto its (2l+1) columns (zero on scalar columns)
        vec_scale = jnp.dot(sfac, gbcast_ref[...],
                            preferred_element_type=jnp.float32)  # (TR, FOLD*D)

        # scalar channels: silu(x) = x*sigmoid(x); vector channels: x * sigmoid(norm)
        out = x * (smask_ref[...] * jax.nn.sigmoid(x) + vec_scale)
        # final NaN scrub (matches the module's last torch.where)
        o_ref[...] = jnp.where(jnp.isnan(out), jnp.zeros_like(out), out)
    return kernel


def safe_norm_activation(x, irreps, eps=1e-8, tile_rows=2048):
    """Fused SafeNormActivation forward. x: (N, D) float32. tile_rows counts FOLDED rows."""
    x = jnp.asarray(x, jnp.float32)
    N, D = x.shape
    smask, gsum, gbcast = build_irreps_operators(irreps, fold=FOLD)
    Df = D * FOLD
    assert gsum.shape[0] == Df, "irreps do not match feature dimension"
    NGf = gsum.shape[1]

    # pad only to the fold alignment (<= FOLD-1 rows), then lane-dense metadata reshape
    Np = _round_up(max(N, 1), FOLD)
    xp = jnp.pad(x, ((0, Np - N), (0, 0))) if Np != N else x
    NF = Np // FOLD
    xf = xp.reshape(NF, Df)

    # block shape must be (8,128)-aligned or equal to the full array dims
    if tile_rows >= NF:
        tile_f = NF                               # single full block (any NF allowed)
    else:
        tile_f = max(8, (tile_rows // 8) * 8)     # sublane-aligned; tail block is masked

    grid = (pl.cdiv(NF, tile_f),)

    outf = pl.pallas_call(
        make_safe_norm_activation_kernel(eps),
        out_shape=jax.ShapeDtypeStruct((NF, Df), jnp.float32),
        grid=grid,
        in_specs=[
            pl.BlockSpec((tile_f, Df), lambda i: (i, 0)),        # streamed lane-dense row tiles
            pl.BlockSpec((1, Df), lambda i: (0, 0)),             # constants: fetched once
            pl.BlockSpec((Df, NGf), lambda i: (0, 0)),
            pl.BlockSpec((NGf, Df), lambda i: (0, 0)),
        ],
        out_specs=pl.BlockSpec((tile_f, Df), lambda i: (i, 0)),
        compiler_params=pltpu.CompilerParams(
            dimension_semantics=("parallel",),                   # megacore-friendly (v7x)
            vmem_limit_bytes=32 << 20),
    )(xf, smask, gsum, gbcast)

    out = outf.reshape(Np, D)
    return out[:N] if Np != N else out


# --------------------------------------------------------------------------- #
# pure-JAX reference (mirrors the PyTorch forward) for a sanity check
# --------------------------------------------------------------------------- #
def safe_norm_activation_ref(x, irreps, eps=1e-8):
    x = jnp.where(jnp.isnan(x), 0.0, x)
    outs, start = [], 0
    for mul, l in irreps:
        d = 2 * l + 1
        end = start + mul * d
        xs = x[:, start:end]
        if l == 0:
            outs.append(jax.nn.silu(xs))
        else:
            v = xs.reshape(x.shape[0], mul, d)
            norm = jnp.linalg.norm(v, axis=-1, keepdims=True)
            safe = jnp.maximum(norm, eps)
            act = jax.nn.silu(norm)
            scaled = jnp.where(norm < eps, 0.0, v / safe * act)
            outs.append(scaled.reshape(x.shape[0], mul * d))
        start = end
    out = jnp.concatenate(outs, axis=-1)
    return jnp.where(jnp.isnan(out), 0.0, out)


# --------------------------------------------------------------------------- #
# main
# --------------------------------------------------------------------------- #
if __name__ == "__main__":
    # irreps_in = "8x0e + 4x1o"  ->  feature dim = 8 + 4*3 = 20
    irreps = [(8, 0), (4, 1)]
    N = 64
    D = irreps_dim(irreps)
    EPS = 1e-8

    key = jax.random.PRNGKey(0)
    x = jax.random.normal(key, (N, D), dtype=jnp.float32)
    # exercise the zero-norm and NaN-scrub paths of the module
    x = x.at[0, 8:11].set(0.0)          # first l=1 group of row 0 has zero norm
    x = x.at[1, 3].set(jnp.nan)         # NaN in a scalar channel
    x = x.at[2, 14].set(jnp.nan)        # NaN in a vector channel

    out = safe_norm_activation(x, irreps, eps=EPS)
    out = jax.block_until_ready(out)

    ref = safe_norm_activation_ref(x, irreps, eps=EPS)

    assert out.shape == (N, D)
    assert bool(jnp.all(jnp.isfinite(out)))
    assert bool(jnp.allclose(out, ref, rtol=2e-2, atol=2e-3)), \
        float(jnp.max(jnp.abs(out - ref)))
    print("KERNEL_OK")
</pallas_src>

<mosaic_0001>
module attributes {stable_mosaic.version = 11 : i64} {
  func.func @kernel(%arg0: i32, %arg1: memref<2x640xf32, #tpu.memory_space<vmem>>, %arg2: memref<1x640xf32, #tpu.memory_space<vmem>>, %arg3: memref<640x128xf32, #tpu.memory_space<vmem>>, %arg4: memref<128x640xf32, #tpu.memory_space<vmem>>, %arg5: memref<2x640xf32, #tpu.memory_space<vmem>>) attributes {dimension_semantics = [#tpu.dimension_semantics<parallel>], iteration_bounds = array<i64: 1>, scalar_prefetch = 0 : i64, scratch_operands = 0 : i64, tpu.core_type = #tpu.core_type<tc>, window_params = [{transform_indices = @transform_0, window_bounds = array<i64: 2, 640>}, {pipeline_mode = #tpu.pipeline_mode<synchronous>, transform_indices = @transform_1, window_bounds = array<i64: 1, 640>}, {pipeline_mode = #tpu.pipeline_mode<synchronous>, transform_indices = @transform_2, window_bounds = array<i64: 640, 128>}, {pipeline_mode = #tpu.pipeline_mode<synchronous>, transform_indices = @transform_3, window_bounds = array<i64: 128, 640>}, {transform_indices = @transform_4, window_bounds = array<i64: 2, 640>}]} {
    %c0 = arith.constant 0 : index
    %c0_0 = arith.constant 0 : index
    %0 = vector.load %arg1[%c0, %c0_0] : memref<2x640xf32, #tpu.memory_space<vmem>>, vector<2x640xf32>
    %1 = arith.cmpf one, %0, %0 : vector<2x640xf32>
    %cst = arith.constant 0.000000e+00 : f32
    %2 = vector.broadcast %cst : f32 to vector<2x640xf32>
    %3 = arith.select %1, %2, %0 : vector<2x640xi1>, vector<2x640xf32>
    %4 = arith.mulf %3, %3 : vector<2x640xf32>
    %c0_1 = arith.constant 0 : index
    %c0_2 = arith.constant 0 : index
    %5 = vector.load %arg3[%c0_1, %c0_2] : memref<640x128xf32, #tpu.memory_space<vmem>>, vector<640x128xf32>
    %cst_3 = arith.constant dense<0.000000e+00> : vector<2x128xf32>
    %6 = tpu.matmul %4, %5, %cst_3 {dimension_numbers = #tpu.dot_dimension_numbers<[1], [0], [0], [1], [0, 0, 1, 1], [], []>} : vector<2x640xf32>, vector<640x128xf32>, vector<2x128xf32> -> vector<2x128xf32>
    %7 = math.sqrt %6 : vector<2x128xf32>
    %cst_4 = arith.constant 9.99999993E-9 : f32
    %8 = vector.broadcast %cst_4 : f32 to vector<2x128xf32>
    %9 = arith.cmpf olt, %7, %8 : vector<2x128xf32>
    %cst_5 = arith.constant 0.000000e+00 : f32
    %10 = vector.broadcast %cst_5 : f32 to vector<2x128xf32>
    %11 = arith.negf %7 : vector<2x128xf32>
    %12 = math.exp %11 : vector<2x128xf32>
    %cst_6 = arith.constant 1.000000e+00 : f32
    %13 = vector.broadcast %cst_6 : f32 to vector<2x128xf32>
    %14 = arith.addf %13, %12 : vector<2x128xf32>
    %15 = arith.divf %13, %14 : vector<2x128xf32>
    %16 = arith.select %9, %10, %15 : vector<2x128xi1>, vector<2x128xf32>
    %c0_7 = arith.constant 0 : index
    %c0_8 = arith.constant 0 : index
    %17 = vector.load %arg4[%c0_7, %c0_8] : memref<128x640xf32, #tpu.memory_space<vmem>>, vector<128x640xf32>
    %cst_9 = arith.constant dense<0.000000e+00> : vector<2x640xf32>
    %18 = tpu.matmul %16, %17, %cst_9 {dimension_numbers = #tpu.dot_dimension_numbers<[1], [0], [0], [1], [0, 0, 1, 1], [], []>} : vector<2x128xf32>, vector<128x640xf32>, vector<2x640xf32> -> vector<2x640xf32>
    %c0_10 = arith.constant 0 : index
    %c0_11 = arith.constant 0 : index
    %19 = vector.load %arg2[%c0_10, %c0_11] : memref<1x640xf32, #tpu.memory_space<vmem>>, vector<1x640xf32>
    %20 = arith.negf %3 : vector<2x640xf32>
    %21 = math.exp %20 : vector<2x640xf32>
    %cst_12 = arith.constant 1.000000e+00 : f32
    %22 = vector.broadcast %cst_12 : f32 to vector<2x640xf32>
    %23 = arith.addf %22, %21 : vector<2x640xf32>
    %24 = arith.divf %22, %23 : vector<2x640xf32>
    %25 = vector.broadcast %19 : vector<1x640xf32> to vector<2x640xf32>
    %26 = arith.mulf %25, %24 : vector<2x640xf32>
    %27 = arith.addf %26, %18 : vector<2x640xf32>
    %28 = arith.mulf %3, %27 : vector<2x640xf32>
    %29 = arith.cmpf one, %28, %28 : vector<2x640xf32>
    %cst_13 = arith.constant 0.000000e+00 : f32
    %30 = vector.broadcast %cst_13 : f32 to vector<2x640xf32>
    %31 = arith.select %29, %30, %28 : vector<2x640xi1>, vector<2x640xf32>
    %c0_14 = arith.constant 0 : index
    %c0_15 = arith.constant 0 : index
    %32 = vector.load %arg5[%c0_14, %c0_15] : memref<2x640xf32, #tpu.memory_space<vmem>>, vector<2x640xf32>
    tpu.vector_store %arg5[%c0_14, %c0_15], %31 {strides = array<i32>} : memref<2x640xf32, #tpu.memory_space<vmem>>, vector<2x640xf32>,
    return
  }
  func.func @transform_0(%arg0: i32) -> (i32, i32) {
    %c0_i32 = arith.constant 0 : i32
    %c0_i32_0 = arith.constant 0 : i32
    return %arg0, %c0_i32 : i32, i32
  }
  func.func @transform_1(%arg0: i32) -> (i32, i32) {
    %c0_i32 = arith.constant 0 : i32
    %c0_i32_0 = arith.constant 0 : i32
    %c0_i32_1 = arith.constant 0 : i32
    return %c0_i32, %c0_i32_0 : i32, i32
  }
  func.func @transform_2(%arg0: i32) -> (i32, i32) {
    %c0_i32 = arith.constant 0 : i32
    %c0_i32_0 = arith.constant 0 : i32
    %c0_i32_1 = arith.constant 0 : i32
    return %c0_i32, %c0_i32_0 : i32, i32
  }
  func.func @transform_3(%arg0: i32) -> (i32, i32) {
    %c0_i32 = arith.constant 0 : i32
    %c0_i32_0 = arith.constant 0 : i32
    %c0_i32_1 = arith.constant 0 : i32
    return %c0_i32, %c0_i32_0 : i32, i32
  }
  func.func @transform_4(%arg0: i32) -> (i32, i32) {
    %c0_i32 = arith.constant 0 : i32
    %c0_i32_0 = arith.constant 0 : i32
    return %arg0, %c0_i32 : i32, i32
  }
}

</mosaic_0001>

<llo_original>
// kernel: tpu_custom_call.1
$region0: #{tpu_custom_call.1}
  #allocation0 [shape = 'u32[]', space=smem, size = 0x4, offset = 0x4, fixed_abs, tag = 'smem constant byte address 0x4 - core index']
  #allocation1 [shape = 'u32[144,128]{1,0:T(1,128)}', space=vmem, size = 0x12000, scoped, tag = 'internal scratch']
  %s0 = inlined_call_operand.hbm [shape: f32[2,640], index: 0, kind: input, shape index: {}]
  %s1 = inlined_call_operand.hbm [shape: f32[1,640], index: 1, kind: input, shape index: {}]
  %s2 = inlined_call_operand.hbm [shape: f32[640,128], index: 2, kind: input, shape index: {}]
  %s3 = inlined_call_operand.hbm [shape: f32[128,640], index: 3, kind: input, shape index: {}]
  %s4 = inlined_call_operand.hbm [shape: f32[2,640], index: 4, kind: output, shape index: {}]
  %s5 = sld [smem:[#allocation0]]
  $region42: #{tpu_custom_call.1} parent=0
    _
  %s7 = ssub.s32 1, %s5
  %s8 = scalar_select 0, %s7, %s5
  $region1: #{tpu_custom_call.1} parent=0
    #allocation2 [shape = 'u8[5120]{0}', space=vmem, size = 0x1400, scoped, tag = 'input window, operand 0, single buffered']
    #allocation3 [shape = 's32[1]{0}', space=sflag, size = 0x4, scoped, tag = 'scoped memory for tpu_custom_call.1']
    #allocation4 [shape = 's32[1]{0}', space=sflag, size = 0x4, scoped, tag = 'scoped memory for tpu_custom_call.1']
    #allocation5 [shape = 'u8[2560]{0}', space=vmem, size = 0xc00, scoped, tag = 'input window, operand 1, single buffered']
    #allocation6 [shape = 's32[1]{0}', space=sflag, size = 0x4, scoped, tag = 'scoped memory for tpu_custom_call.1']
    #allocation7 [shape = 'u8[327680]{0}', space=vmem, size = 0x50000, scoped, tag = 'input window, operand 2, single buffered']
    #allocation8 [shape = 'u8[327680]{0}', space=vmem, size = 0x50000, scoped, tag = 'input window, operand 3, single buffered']
    #allocation9 [shape = 's32[1]{0}', space=sflag, size = 0x4, scoped, tag = 'scoped memory for tpu_custom_call.1']
    #allocation10 [shape = 'u8[5120]{0}', space=vmem, size = 0x1400, scoped, tag = 'output window, operand 0, single buffered']
    %9 = vsyncpa [#allocation3], 0
    %10 = vsyncpa [#allocation6], 0
    %11 = vsyncpa [#allocation9], 0
    %12 = vsyncpa [#allocation4], 0
    // Predicated region
    $region2: #{tpu_custom_call.1} parent=1 // pred_check
      _
    $region3: #{tpu_custom_call.1} parent=1 // pred_check_branch
      %14 = sbr.rel (0) target = $region5
    $region4: #{tpu_custom_call.1} parent=1 // pred_region
      %s16 = ssub.s32 160, 160
      %17 = vsyncadd [#allocation3], %s16
      %s19 = sshll.u32 [#allocation2], 4
      %s20 = int_to_ptr.vmem [resolvable:$true] %s19
      %22 = dma.hbm_to_vmem [thread:$0]  %s0, 160, %s20, [#allocation3]
    $region5: #{tpu_custom_call.1} parent=1 // pred_fallthru
      _
    // Predicated region
    $region6: #{tpu_custom_call.1} parent=1 // pred_check
      _
    $region7: #{tpu_custom_call.1} parent=1 // pred_check_branch
      %24 = sbr.rel (0) target = $region9
    $region8: #{tpu_custom_call.1} parent=1 // pred_region
      %s26 = ssub.s32 80, 80
      %27 = vsyncadd [#allocation6], %s26
      %s29 = sshll.u32 [#allocation5], 4
      %s30 = int_to_ptr.vmem [resolvable:$true] %s29
      %32 = dma.hbm_to_vmem [thread:$0]  %s1, 80, %s30, [#allocation6]
    $region9: #{tpu_custom_call.1} parent=1 // pred_fallthru
      _
    // Predicated region
    $region10: #{tpu_custom_call.1} parent=1 // pred_check
      _
    $region11: #{tpu_custom_call.1} parent=1 // pred_check_branch
      %34 = sbr.rel (0) target = $region13
    $region12: #{tpu_custom_call.1} parent=1 // pred_region
      %s36 = ssub.s32 10240, 10240
      %37 = vsyncadd [#allocation6], %s36
      %s38 = sshll.u32 [#allocation7], 4
      %s39 = int_to_ptr.vmem [resolvable:$true] %s38
      %44 = dma.hbm_to_vmem [thread:$0]  %s2, 10240, %s39, [#allocation6], 128, 128, 8
    $region13: #{tpu_custom_call.1} parent=1 // pred_fallthru
      _
    // Predicated region
    $region14: #{tpu_custom_call.1} parent=1 // pred_check
      _
    $region15: #{tpu_custom_call.1} parent=1 // pred_check_branch
      %46 = sbr.rel (0) target = $region17
    $region16: #{tpu_custom_call.1} parent=1 // pred_region
      %s48 = ssub.s32 10240, 10240
      %49 = vsyncadd [#allocation9], %s48
      %s50 = sshll.u32 [#allocation8], 4
      %s51 = int_to_ptr.vmem [resolvable:$true] %s50
      %56 = dma.hbm_to_vmem [thread:$0]  %s3, 10240, %s51, [#allocation9], 640, 640, 40
    $region17: #{tpu_custom_call.1} parent=1 // pred_fallthru
      _
    // Predicated region
    $region18: #{tpu_custom_call.1} parent=1 // pred_check
      _
    $region19: #{tpu_custom_call.1} parent=1 // pred_check_branch
      %58 = sbr.rel (0) target = $region21
    $region20: #{tpu_custom_call.1} parent=1 // pred_region
      %59 = dma.done [#allocation3], 160
    $region21: #{tpu_custom_call.1} parent=1 // pred_fallthru
      _
    // Predicated region
    $region22: #{tpu_custom_call.1} parent=1 // pred_check
      _
    $region23: #{tpu_custom_call.1} parent=1 // pred_check_branch
      %61 = sbr.rel (0) target = $region25
    $region24: #{tpu_custom_call.1} parent=1 // pred_region
      %62 = dma.done [#allocation6], 80
    $region25: #{tpu_custom_call.1} parent=1 // pred_fallthru
      _
    // Predicated region
    $region26: #{tpu_custom_call.1} parent=1 // pred_check
      _
    $region27: #{tpu_custom_call.1} parent=1 // pred_check_branch
      %64 = sbr.rel (0) target = $region29
    $region28: #{tpu_custom_call.1} parent=1 // pred_region
      %65 = dma.done [#allocation6], 10240
    $region29: #{tpu_custom_call.1} parent=1 // pred_fallthru
      _
    // Predicated region
    $region30: #{tpu_custom_call.1} parent=1 // pred_check
      _
    $region31: #{tpu_custom_call.1} parent=1 // pred_check_branch
      %67 = sbr.rel (0) target = $region33
    $region32: #{tpu_custom_call.1} parent=1 // pred_region
      %68 = dma.done [#allocation9], 10240
    $region33: #{tpu_custom_call.1} parent=1 // pred_fallthru
      _
    %v69 = vld [vmem:[#allocation2] sm:$0xff]
    %v70 = vld [vmem:[#allocation2 + $0x8] sm:$0x3]
    %vm71 = vcmp.ne.f32.partialorder %v69, %v69
    %vm72 = vcmp.ne.f32.partialorder %v70, %v70
    %v73 = vsel %vm71, 0.0, %v69
    %v74 = vsel %vm72, 0.0, %v70
    %v75 = vmul.f32 %v73, %v73
    %v76 = vmul.f32 %v74, %v74
    %v77 = vld [vmem:[#allocation7] sm:$0xff]
    %v78 = vld [vmem:[#allocation7 + $0x8] sm:$0xff]
    %v79 = vld [vmem:[#allocation7 + $0x10] sm:$0xff]
    %v80 = vld [vmem:[#allocation7 + $0x18] sm:$0xff]
    %v81 = vld [vmem:[#allocation7 + $0x20] sm:$0xff]
    %v82 = vld [vmem:[#allocation7 + $0x28] sm:$0xff]
    %v83 = vld [vmem:[#allocation7 + $0x30] sm:$0xff]
    %v84 = vld [vmem:[#allocation7 + $0x38] sm:$0xff]
    %v85 = vld [vmem:[#allocation7 + $0x40] sm:$0xff]
    %v86 = vld [vmem:[#allocation7 + $0x48] sm:$0xff]
    %v87 = vld [vmem:[#allocation7 + $0x50] sm:$0xff]
    %v88 = vld [vmem:[#allocation7 + $0x58] sm:$0xff]
    %v89 = vld [vmem:[#allocation7 + $0x60] sm:$0xff]
    %v90 = vld [vmem:[#allocation7 + $0x68] sm:$0xff]
    %v91 = vld [vmem:[#allocation7 + $0x70] sm:$0xff]
    %v92 = vld [vmem:[#allocation7 + $0x78] sm:$0xff]
    %v93 = vld [vmem:[#allocation7 + $0x80] sm:$0xff]
    %v94 = vld [vmem:[#allocation7 + $0x88] sm:$0xff]
    %v95 = vld [vmem:[#allocation7 + $0x90] sm:$0xff]
    %v96 = vld [vmem:[#allocation7 + $0x98] sm:$0xff]
    %v97 = vld [vmem:[#allocation7 + $0xa0] sm:$0xff]
    %v98 = vld [vmem:[#allocation7 + $0xa8] sm:$0xff]
    %v99 = vld [vmem:[#allocation7 + $0xb0] sm:$0xff]
    %v100 = vld [vmem:[#allocation7 + $0xb8] sm:$0xff]
    %v101 = vld [vmem:[#allocation7 + $0xc0] sm:$0xff]
    %v102 = vld [vmem:[#allocation7 + $0xc8] sm:$0xff]
    %v103 = vld [vmem:[#allocation7 + $0xd0] sm:$0xff]
    %v104 = vld [vmem:[#allocation7 + $0xd8] sm:$0xff]
    %v105 = vld [vmem:[#allocation7 + $0xe0] sm:$0xff]
    %v106 = vld [vmem:[#allocation7 + $0xe8] sm:$0xff]
    %v107 = vld [vmem:[#allocation7 + $0xf0] sm:$0xff]
    %v108 = vld [vmem:[#allocation7 + $0xf8] sm:$0xff]
    %v109 = vld [vmem:[#allocation7 + $0x100] sm:$0xff]
    %v110 = vld [vmem:[#allocation7 + $0x108] sm:$0xff]
    %v111 = vld [vmem:[#allocation7 + $0x110] sm:$0xff]
    %v112 = vld [vmem:[#allocation7 + $0x118] sm:$0xff]
    %v113 = vld [vmem:[#allocation7 + $0x120] sm:$0xff]
    %v114 = vld [vmem:[#allocation7 + $0x128] sm:$0xff]
    %v115 = vld [vmem:[#allocation7 + $0x130] sm:$0xff]
    %v116 = vld [vmem:[#allocation7 + $0x138] sm:$0xff]
    %v117 = vld [vmem:[#allocation7 + $0x140] sm:$0xff]
    %v118 = vld [vmem:[#allocation7 + $0x148] sm:$0xff]
    %v119 = vld [vmem:[#allocation7 + $0x150] sm:$0xff]
    %v120 = vld [vmem:[#allocation7 + $0x158] sm:$0xff]
    %v121 = vld [vmem:[#allocation7 + $0x160] sm:$0xff]
    %v122 = vld [vmem:[#allocation7 + $0x168] sm:$0xff]
    %v123 = vld [vmem:[#allocation7 + $0x170] sm:$0xff]
    %v124 = vld [vmem:[#allocation7 + $0x178] sm:$0xff]
    %v125 = vld [vmem:[#allocation7 + $0x180] sm:$0xff]
    %v126 = vld [vmem:[#allocation7 + $0x188] sm:$0xff]
    %v127 = vld [vmem:[#allocation7 + $0x190] sm:$0xff]
    %v128 = vld [vmem:[#allocation7 + $0x198] sm:$0xff]
    %v129 = vld [vmem:[#allocation7 + $0x1a0] sm:$0xff]
    %v130 = vld [vmem:[#allocation7 + $0x1a8] sm:$0xff]
    %v131 = vld [vmem:[#allocation7 + $0x1b0] sm:$0xff]
    %v132 = vld [vmem:[#allocation7 + $0x1b8] sm:$0xff]
    %v133 = vld [vmem:[#allocation7 + $0x1c0] sm:$0xff]
    %v134 = vld [vmem:[#allocation7 + $0x1c8] sm:$0xff]
    %v135 = vld [vmem:[#allocation7 + $0x1d0] sm:$0xff]
    %v136 = vld [vmem:[#allocation7 + $0x1d8] sm:$0xff]
    %v137 = vld [vmem:[#allocation7 + $0x1e0] sm:$0xff]
    %v138 = vld [vmem:[#allocation7 + $0x1e8] sm:$0xff]
    %v139 = vld [vmem:[#allocation7 + $0x1f0] sm:$0xff]
    %v140 = vld [vmem:[#allocation7 + $0x1f8] sm:$0xff]
    %v141 = vld [vmem:[#allocation7 + $0x200] sm:$0xff]
    %v142 = vld [vmem:[#allocation7 + $0x208] sm:$0xff]
    %v143 = vld [vmem:[#allocation7 + $0x210] sm:$0xff]
    %v144 = vld [vmem:[#allocation7 + $0x218] sm:$0xff]
    %v145 = vld [vmem:[#allocation7 + $0x220] sm:$0xff]
    %v146 = vld [vmem:[#allocation7 + $0x228] sm:$0xff]
    %v147 = vld [vmem:[#allocation7 + $0x230] sm:$0xff]
    %v148 = vld [vmem:[#allocation7 + $0x238] sm:$0xff]
    %v149 = vld [vmem:[#allocation7 + $0x240] sm:$0xff]
    %v150 = vld [vmem:[#allocation7 + $0x248] sm:$0xff]
    %v151 = vld [vmem:[#allocation7 + $0x250] sm:$0xff]
    %v152 = vld [vmem:[#allocation7 + $0x258] sm:$0xff]
    %v153 = vld [vmem:[#allocation7 + $0x260] sm:$0xff]
    %v154 = vld [vmem:[#allocation7 + $0x268] sm:$0xff]
    %v155 = vld [vmem:[#allocation7 + $0x270] sm:$0xff]
    %v156 = vld [vmem:[#allocation7 + $0x278] sm:$0xff]
    %v159 = vcombine.high %v75, %v75
    %v161 = vunpack.c.l.s4 1983009808
    %v162 = vunpack.c.0.s8 %v161
    %v163 = vlaneseq
    %v164 = vshrl.u32 %v163, 7
    %v165 = vsub.s32 %v162, %v164
    %v166 = vrot.slane %v75, %v165
    %v168 = vunpack.c.l.s4 1983009808
    %v169 = vunpack.c.0.s8 %v168
    %v170 = vlaneseq
    %v171 = vshrl.u32 %v170, 7
    %v172 = vsub.s32 %v169, %v171
    %v173 = vrot.slane %v159, %v172
    %v174 = vcombine.high %v166, %v166
    %v175 = vcombine.high %v173, %v173
    %v177 = vunpack.c.l.s4 1983009808
    %v178 = vunpack.c.0.s8 %v177
    %v179 = vlaneseq
    %v180 = vshrl.u32 %v179, 7
    %v181 = vsub.s32 %v178, %v180
    %v182 = vrot.slane %v76, %v181
    %188 = vmatprep.subr.mxu0 0.0
    %189 = vmatpush1.msra.mxu0 %v77
    %190 = vmatprep.subr.mxu0 0.0
    %191 = vmatpush1.msra.mxu0 %v78
    %192 = vmatprep.subr.mxu0 0.0
    %193 = vmatpush1.msra.mxu0 %v79
    %194 = vmatprep.subr.mxu0 0.0
    %195 = vmatpush1.msra.mxu0 %v80
    %196 = vmatprep.subr.mxu0 0.0
    %197 = vmatpush1.msra.mxu0 %v81
    %198 = vmatprep.subr.mxu0 0.0
    %199 = vmatpush1.msra.mxu0 %v82
    %200 = vmatprep.subr.mxu0 0.0
    %201 = vmatpush1.msra.mxu0 %v83
    %202 = vmatprep.subr.mxu0 0.0
    %203 = vmatpush1.msra.mxu0 %v84
    %204 = vmatprep.subr.mxu0 0.0
    %205 = vmatpush1.msra.mxu0 %v85
    %206 = vmatprep.subr.mxu0 0.0
    %207 = vmatpush1.msra.mxu0 %v86
    %208 = vmatprep.subr.mxu0 0.0
    %209 = vmatpush1.msra.mxu0 %v87
    %210 = vmatprep.subr.mxu0 0.0
    %211 = vmatpush1.msra.mxu0 %v88
    %212 = vmatprep.subr.mxu0 0.0
    %213 = vmatpush1.msra.mxu0 %v89
    %214 = vmatprep.subr.mxu0 0.0
    %215 = vmatpush1.msra.mxu0 %v90
    %216 = vmatprep.subr.mxu0 0.0
    %217 = vmatpush1.msra.mxu0 %v91
    %218 = vmatprep.subr.mxu0 0.0
    %219 = vmatpush1.msra.mxu0 %v92
    %220 = vmatprep.subr.mxu0 0.0
    %221 = vmatpush1.msra.mxu0 %v93
    %222 = vmatprep.subr.mxu0 0.0
    %223 = vmatpush1.msra.mxu0 %v94
    %224 = vmatprep.subr.mxu0 0.0
    %225 = vmatpush1.msra.mxu0 %v95
    %226 = vmatprep.subr.mxu0 0.0
    %227 = vmatpush1.msra.mxu0 %v96
    %228 = vmatprep.subr.mxu0 0.0
    %229 = vmatpush1.msra.mxu0 %v97
    %230 = vmatprep.subr.mxu0 0.0
    %231 = vmatpush1.msra.mxu0 %v98
    %232 = vmatprep.subr.mxu0 0.0
    %233 = vmatpush1.msra.mxu0 %v99
    %234 = vmatprep.subr.mxu0 0.0
    %235 = vmatpush1.msra.mxu0 %v100
    %236 = vmatprep.subr.mxu0 0.0
    %237 = vmatpush1.msra.mxu0 %v101
    %238 = vmatprep.subr.mxu0 0.0
    %239 = vmatpush1.msra.mxu0 %v102
    %240 = vmatprep.subr.mxu0 0.0
    %241 = vmatpush1.msra.mxu0 %v103
    %242 = vmatprep.subr.mxu0 0.0
    %243 = vmatpush1.msra.mxu0 %v104
    %244 = vmatprep.subr.mxu0 0.0
    %245 = vmatpush1.msra.mxu0 %v105
    %246 = vmatprep.subr.mxu0 0.0
    %247 = vmatpush1.msra.mxu0 %v106
    %248 = vmatprep.subr.mxu0 0.0
    %249 = vmatpush1.msra.mxu0 %v107
    %250 = vmatprep.subr.mxu0 0.0
    %251 = vmatpush1.msra.mxu0 %v108
    %252 = vmatprep.mubr.f32.mxu0 %v174
    %253 = vmatmul.mubr.f32.gmra.mrb[0].mxu0 %v166
    %v254 = vpop.f32.mrb[0].mxu0
    %v255 = vadd.f32 0.0, %v254
    %v256 = vpop.f32.mrb[0].mxu0
    %257 = vdwg.mxu0
    %258 = vmatprep.subr.mxu0 0.0
    %259 = vmatpush1.msra.mxu0 %v109
    %260 = vmatprep.subr.mxu0 0.0
    %261 = vmatpush1.msra.mxu0 %v110
    %262 = vmatprep.subr.mxu0 0.0
    %263 = vmatpush1.msra.mxu0 %v111
    %264 = vmatprep.subr.mxu0 0.0
    %265 = vmatpush1.msra.mxu0 %v112
    %266 = vmatprep.subr.mxu0 0.0
    %267 = vmatpush1.msra.mxu0 %v113
    %268 = vmatprep.subr.mxu0 0.0
    %269 = vmatpush1.msra.mxu0 %v114
    %270 = vmatprep.subr.mxu0 0.0
    %271 = vmatpush1.msra.mxu0 %v115
    %272 = vmatprep.subr.mxu0 0.0
    %273 = vmatpush1.msra.mxu0 %v116
    %274 = vmatprep.subr.mxu0 0.0
    %275 = vmatpush1.msra.mxu0 %v117
    %276 = vmatprep.subr.mxu0 0.0
    %277 = vmatpush1.msra.mxu0 %v118
    %278 = vmatprep.subr.mxu0 0.0
    %279 = vmatpush1.msra.mxu0 %v119
    %280 = vmatprep.subr.mxu0 0.0
    %281 = vmatpush1.msra.mxu0 %v120
    %282 = vmatprep.subr.mxu0 0.0
    %283 = vmatpush1.msra.mxu0 %v121
    %284 = vmatprep.subr.mxu0 0.0
    %285 = vmatpush1.msra.mxu0 %v122
    %286 = vmatprep.subr.mxu0 0.0
    %287 = vmatpush1.msra.mxu0 %v123
    %288 = vmatprep.subr.mxu0 0.0
    %289 = vmatpush1.msra.mxu0 %v124
    %290 = vmatprep.subr.mxu0 0.0
    %291 = vmatpush1.msra.mxu0 %v125
    %292 = vmatprep.subr.mxu0 0.0
    %293 = vmatpush1.msra.mxu0 %v126
    %294 = vmatprep.subr.mxu0 0.0
    %295 = vmatpush1.msra.mxu0 %v127
    %296 = vmatprep.subr.mxu0 0.0
    %297 = vmatpush1.msra.mxu0 %v128
    %298 = vmatprep.subr.mxu0 0.0
    %299 = vmatpush1.msra.mxu0 %v129
    %300 = vmatprep.subr.mxu0 0.0
    %301 = vmatpush1.msra.mxu0 %v130
    %302 = vmatprep.subr.mxu0 0.0
    %303 = vmatpush1.msra.mxu0 %v131
    %304 = vmatprep.subr.mxu0 0.0
    %305 = vmatpush1.msra.mxu0 %v132
    %306 = vmatprep.subr.mxu0 0.0
    %307 = vmatpush1.msra.mxu0 %v133
    %308 = vmatprep.subr.mxu0 0.0
    %309 = vmatpush1.msra.mxu0 %v134
    %310 = vmatprep.subr.mxu0 0.0
    %311 = vmatpush1.msra.mxu0 %v135
    %312 = vmatprep.subr.mxu0 0.0
    %313 = vmatpush1.msra.mxu0 %v136
    %314 = vmatprep.subr.mxu0 0.0
    %315 = vmatpush1.msra.mxu0 %v137
    %316 = vmatprep.subr.mxu0 0.0
    %317 = vmatpush1.msra.mxu0 %v138
    %318 = vmatprep.subr.mxu0 0.0
    %319 = vmatpush1.msra.mxu0 %v139
    %320 = vmatprep.subr.mxu0 0.0
    %321 = vmatpush1.msra.mxu0 %v140
    %322 = vmatprep.mubr.f32.mxu0 %v175
    %323 = vmatmul.mubr.f32.gmra.mrb[0].mxu0 %v173
    %v324 = vpop.f32.mrb[0].mxu0
    %v325 = vadd.f32 %v255, %v324
    %v326 = vpop.f32.mrb[0].mxu0
    %327 = vdwg.mxu0
    %328 = vmatprep.subr.mxu0 0.0
    %329 = vmatpush1.msra.mxu0 %v141
    %330 = vmatprep.subr.mxu0 0.0
    %331 = vmatpush1.msra.mxu0 %v142
    %332 = vmatprep.subr.mxu0 0.0
    %333 = vmatpush1.msra.mxu0 %v143
    %334 = vmatprep.subr.mxu0 0.0
    %335 = vmatpush1.msra.mxu0 %v144
    %336 = vmatprep.subr.mxu0 0.0
    %337 = vmatpush1.msra.mxu0 %v145
    %338 = vmatprep.subr.mxu0 0.0
    %339 = vmatpush1.msra.mxu0 %v146
    %340 = vmatprep.subr.mxu0 0.0
    %341 = vmatpush1.msra.mxu0 %v147
    %342 = vmatprep.subr.mxu0 0.0
    %343 = vmatpush1.msra.mxu0 %v148
    %344 = vmatprep.subr.mxu0 0.0
    %345 = vmatpush1.msra.mxu0 %v149
    %346 = vmatprep.subr.mxu0 0.0
    %347 = vmatpush1.msra.mxu0 %v150
    %348 = vmatprep.subr.mxu0 0.0
    %349 = vmatpush1.msra.mxu0 %v151
    %350 = vmatprep.subr.mxu0 0.0
    %351 = vmatpush1.msra.mxu0 %v152
    %352 = vmatprep.subr.mxu0 0.0
    %353 = vmatpush1.msra.mxu0 %v153
    %354 = vmatprep.subr.mxu0 0.0
    %355 = vmatpush1.msra.mxu0 %v154
    %356 = vmatprep.subr.mxu0 0.0
    %357 = vmatpush1.msra.mxu0 %v155
    %358 = vmatprep.subr.mxu0 0.0
    %359 = vmatpush1.msra.mxu0 %v156
    %360 = vmatprep.subr.mxu0 0.0
    %361 = vmatpush1.msra.mxu0 0.0
    %362 = vmatprep.subr.mxu0 0.0
    %363 = vmatpush1.msra.mxu0 0.0
    %364 = vmatprep.subr.mxu0 0.0
    %365 = vmatpush1.msra.mxu0 0.0
    %366 = vmatprep.subr.mxu0 0.0
    %367 = vmatpush1.msra.mxu0 0.0
    %368 = vmatprep.subr.mxu0 0.0
    %369 = vmatpush1.msra.mxu0 0.0
    %370 = vmatprep.subr.mxu0 0.0
    %371 = vmatpush1.msra.mxu0 0.0
    %372 = vmatprep.subr.mxu0 0.0
    %373 = vmatpush1.msra.mxu0 0.0
    %374 = vmatprep.subr.mxu0 0.0
    %375 = vmatpush1.msra.mxu0 0.0
    %376 = vmatprep.subr.mxu0 0.0
    %377 = vmatpush1.msra.mxu0 0.0
    %378 = vmatprep.subr.mxu0 0.0
    %379 = vmatpush1.msra.mxu0 0.0
    %380 = vmatprep.subr.mxu0 0.0
    %381 = vmatpush1.msra.mxu0 0.0
    %382 = vmatprep.subr.mxu0 0.0
    %383 = vmatpush1.msra.mxu0 0.0
    %384 = vmatprep.subr.mxu0 0.0
    %385 = vmatpush1.msra.mxu0 0.0
    %386 = vmatprep.subr.mxu0 0.0
    %387 = vmatpush1.msra.mxu0 0.0
    %388 = vmatprep.subr.mxu0 0.0
    %389 = vmatpush1.msra.mxu0 0.0
    %390 = vmatprep.subr.mxu0 0.0
    %391 = vmatpush1.msra.mxu0 0.0
    %392 = vmatprep.mubr.f32.mxu0 0.0
    %393 = vmatmul.mubr.f32.gmra.mrb[0].mxu0 %v182
    %v394 = vpop.f32.mrb[0].mxu0
    %v395 = vadd.f32 %v325, %v394
    %v396 = vpop.f32.mrb[0].mxu0
    %397 = vdwg.mxu0
    %v398 = vrsqrt.pop %v395
    %v399 = vmul.f32 %v395, %v398
    %vm400 = vcmp.eq.f32.partialorder %v395, inf
    %v401 = vsel %vm400, %v395, %v399
    %vm402 = vcmp.eq.f32.partialorder %v395, 0.0
    %v403 = vand.u32 %v395, 2147483648
    %v404 = vsel %vm402, %v403, %v401
    %vm405 = vcmp.lt.f32.partialorder %v404, 1e-08
    %v406 = vxor.u32 %v404, 2147483648
    %v407 = vmul.f32 %v406, 1.442695
    %v408 = vpow.pop %v407
    %v409 = vadd.f32 %v408, 1.0
    %v410 = vrcp.pop %v409
    %v411 = vmul.f32 1.0, %v410
    %v412 = vsel %vm405, 0.0, %v411
    %v413 = vld [vmem:[#allocation8] sm:$0xff]
    %v414 = vld [vmem:[#allocation8 + $0x8] sm:$0xff]
    %v415 = vld [vmem:[#allocation8 + $0x10] sm:$0xff]
    %v416 = vld [vmem:[#allocation8 + $0x18] sm:$0xff]
    %v417 = vld [vmem:[#allocation8 + $0x20] sm:$0xff]
    %v418 = vld [vmem:[#allocation8 + $0x28] sm:$0xff]
    %v419 = vld [vmem:[#allocation8 + $0x30] sm:$0xff]
    %v420 = vld [vmem:[#allocation8 + $0x38] sm:$0xff]
    %v421 = vld [vmem:[#allocation8 + $0x40] sm:$0xff]
    %v422 = vld [vmem:[#allocation8 + $0x48] sm:$0xff]
    %v423 = vld [vmem:[#allocation8 + $0x50] sm:$0xff]
    %v424 = vld [vmem:[#allocation8 + $0x58] sm:$0xff]
    %v425 = vld [vmem:[#allocation8 + $0x60] sm:$0xff]
    %v426 = vld [vmem:[#allocation8 + $0x68] sm:$0xff]
    %v427 = vld [vmem:[#allocation8 + $0x70] sm:$0xff]
    %v428 = vld [vmem:[#allocation8 + $0x78] sm:$0xff]
    %v429 = vld [vmem:[#allocation8 + $0x80] sm:$0xff]
    %v430 = vld [vmem:[#allocation8 + $0x88] sm:$0xff]
    %v431 = vld [vmem:[#allocation8 + $0x90] sm:$0xff]
    %v432 = vld [vmem:[#allocation8 + $0x98] sm:$0xff]
    %v433 = vld [vmem:[#allocation8 + $0xa0] sm:$0xff]
    %v434 = vld [vmem:[#allocation8 + $0xa8] sm:$0xff]
    %v435 = vld [vmem:[#allocation8 + $0xb0] sm:$0xff]
    %v436 = vld [vmem:[#allocation8 + $0xb8] sm:$0xff]
    %v437 = vld [vmem:[#allocation8 + $0xc0] sm:$0xff]
    %v438 = vld [vmem:[#allocation8 + $0xc8] sm:$0xff]
    %v439 = vld [vmem:[#allocation8 + $0xd0] sm:$0xff]
    %v440 = vld [vmem:[#allocation8 + $0xd8] sm:$0xff]
    %v441 = vld [vmem:[#allocation8 + $0xe0] sm:$0xff]
    %v442 = vld [vmem:[#allocation8 + $0xe8] sm:$0xff]
    %v443 = vld [vmem:[#allocation8 + $0xf0] sm:$0xff]
    %v444 = vld [vmem:[#allocation8 + $0xf8] sm:$0xff]
    %v445 = vld [vmem:[#allocation8 + $0x100] sm:$0xff]
    %v446 = vld [vmem:[#allocation8 + $0x108] sm:$0xff]
    %v447 = vld [vmem:[#allocation8 + $0x110] sm:$0xff]
    %v448 = vld [vmem:[#allocation8 + $0x118] sm:$0xff]
    %v449 = vld [vmem:[#allocation8 + $0x120] sm:$0xff]
    %v450 = vld [vmem:[#allocation8 + $0x128] sm:$0xff]
    %v451 = vld [vmem:[#allocation8 + $0x130] sm:$0xff]
    %v452 = vld [vmem:[#allocation8 + $0x138] sm:$0xff]
    %v453 = vld [vmem:[#allocation8 + $0x140] sm:$0xff]
    %v454 = vld [vmem:[#allocation8 + $0x148] sm:$0xff]
    %v455 = vld [vmem:[#allocation8 + $0x150] sm:$0xff]
    %v456 = vld [vmem:[#allocation8 + $0x158] sm:$0xff]
    %v457 = vld [vmem:[#allocation8 + $0x160] sm:$0xff]
    %v458 = vld [vmem:[#allocation8 + $0x168] sm:$0xff]
    %v459 = vld [vmem:[#allocation8 + $0x170] sm:$0xff]
    %v460 = vld [vmem:[#allocation8 + $0x178] sm:$0xff]
    %v461 = vld [vmem:[#allocation8 + $0x180] sm:$0xff]
    %v462 = vld [vmem:[#allocation8 + $0x188] sm:$0xff]
    %v463 = vld [vmem:[#allocation8 + $0x190] sm:$0xff]
    %v464 = vld [vmem:[#allocation8 + $0x198] sm:$0xff]
    %v465 = vld [vmem:[#allocation8 + $0x1a0] sm:$0xff]
    %v466 = vld [vmem:[#allocation8 + $0x1a8] sm:$0xff]
    %v467 = vld [vmem:[#allocation8 + $0x1b0] sm:$0xff]
    %v468 = vld [vmem:[#allocation8 + $0x1b8] sm:$0xff]
    %v469 = vld [vmem:[#allocation8 + $0x1c0] sm:$0xff]
    %v470 = vld [vmem:[#allocation8 + $0x1c8] sm:$0xff]
    %v471 = vld [vmem:[#allocation8 + $0x1d0] sm:$0xff]
    %v472 = vld [vmem:[#allocation8 + $0x1d8] sm:$0xff]
    %v473 = vld [vmem:[#allocation8 + $0x1e0] sm:$0xff]
    %v474 = vld [vmem:[#allocation8 + $0x1e8] sm:$0xff]
    %v475 = vld [vmem:[#allocation8 + $0x1f0] sm:$0xff]
    %v476 = vld [vmem:[#allocation8 + $0x1f8] sm:$0xff]
    %v477 = vld [vmem:[#allocation8 + $0x200] sm:$0xff]
    %v478 = vld [vmem:[#allocation8 + $0x208] sm:$0xff]
    %v479 = vld [vmem:[#allocation8 + $0x210] sm:$0xff]
    %v480 = vld [vmem:[#allocation8 + $0x218] sm:$0xff]
    %v481 = vld [vmem:[#allocation8 + $0x220] sm:$0xff]
    %v482 = vld [vmem:[#allocation8 + $0x228] sm:$0xff]
    %v483 = vld [vmem:[#allocation8 + $0x230] sm:$0xff]
    %v484 = vld [vmem:[#allocation8 + $0x238] sm:$0xff]
    %v485 = vld [vmem:[#allocation8 + $0x240] sm:$0xff]
    %v486 = vld [vmem:[#allocation8 + $0x248] sm:$0xff]
    %v487 = vld [vmem:[#allocation8 + $0x250] sm:$0xff]
    %v488 = vld [vmem:[#allocation8 + $0x258] sm:$0xff]
    %v489 = vld [vmem:[#allocation8 + $0x260] sm:$0xff]
    %v490 = vld [vmem:[#allocation8 + $0x268] sm:$0xff]
    %v491 = vld [vmem:[#allocation8 + $0x270] sm:$0xff]
    %v492 = vld [vmem:[#allocation8 + $0x278] sm:$0xff]
    %493 = vmatprep.subr.mxu0 %v414
    %494 = vmatpush1.msra.mxu0 %v413
    %495 = vmatprep.subr.mxu0 %v419
    %496 = vmatpush1.msra.mxu0 %v418
    %497 = vmatprep.subr.mxu0 %v424
    %498 = vmatpush1.msra.mxu0 %v423
    %499 = vmatprep.subr.mxu0 %v429
    %500 = vmatpush1.msra.mxu0 %v428
    %501 = vmatprep.subr.mxu0 %v434
    %502 = vmatpush1.msra.mxu0 %v433
    %503 = vmatprep.subr.mxu0 %v439
    %504 = vmatpush1.msra.mxu0 %v438
    %505 = vmatprep.subr.mxu0 %v444
    %506 = vmatpush1.msra.mxu0 %v443
    %507 = vmatprep.subr.mxu0 %v449
    %508 = vmatpush1.msra.mxu0 %v448
    %509 = vmatprep.subr.mxu0 %v454
    %510 = vmatpush1.msra.mxu0 %v453
    %511 = vmatprep.subr.mxu0 %v459
    %512 = vmatpush1.msra.mxu0 %v458
    %513 = vmatprep.subr.mxu0 %v464
    %514 = vmatpush1.msra.mxu0 %v463
    %515 = vmatprep.subr.mxu0 %v469
    %516 = vmatpush1.msra.mxu0 %v468
    %517 = vmatprep.subr.mxu0 %v474
    %518 = vmatpush1.msra.mxu0 %v473
    %519 = vmatprep.subr.mxu0 %v479
    %520 = vmatpush1.msra.mxu0 %v478
    %521 = vmatprep.subr.mxu0 %v484
    %522 = vmatpush1.msra.mxu0 %v483
    %523 = vmatprep.subr.mxu0 %v489
    %524 = vmatpush1.msra.mxu0 %v488
    %525 = vmatprep.subr.mxu0 0.0
    %526 = vmatpush1.msra.mxu0 0.0
    %527 = vmatprep.subr.mxu0 0.0
    %528 = vmatpush1.msra.mxu0 0.0
    %529 = vmatprep.subr.mxu0 0.0
    %530 = vmatpush1.msra.mxu0 0.0
    %531 = vmatprep.subr.mxu0 0.0
    %532 = vmatpush1.msra.mxu0 0.0
    %533 = vmatprep.subr.mxu0 0.0
    %534 = vmatpush1.msra.mxu0 0.0
    %535 = vmatprep.subr.mxu0 0.0
    %536 = vmatpush1.msra.mxu0 0.0
    %537 = vmatprep.subr.mxu0 0.0
    %538 = vmatpush1.msra.mxu0 0.0
    %539 = vmatprep.subr.mxu0 0.0
    %540 = vmatpush1.msra.mxu0 0.0
    %541 = vmatprep.subr.mxu0 0.0
    %542 = vmatpush1.msra.mxu0 0.0
    %543 = vmatprep.subr.mxu0 0.0
    %544 = vmatpush1.msra.mxu0 0.0
    %545 = vmatprep.subr.mxu0 0.0
    %546 = vmatpush1.msra.mxu0 0.0
    %547 = vmatprep.subr.mxu0 0.0
    %548 = vmatpush1.msra.mxu0 0.0
    %549 = vmatprep.subr.mxu0 0.0
    %550 = vmatpush1.msra.mxu0 0.0
    %551 = vmatprep.subr.mxu0 0.0
    %552 = vmatpush1.msra.mxu0 0.0
    %553 = vmatprep.subr.mxu0 0.0
    %554 = vmatpush1.msra.mxu0 0.0
    %555 = vmatprep.subr.mxu0 0.0
    %556 = vmatpush1.msra.mxu0 0.0
    %557 = vmatprep.mubr.f32.mxu0 0.0
    %558 = vmatmul.mubr.f32.gmra.mrb[0].mxu0 %v412
    %v559 = vpop.f32.mrb[0].mxu0
    %v560 = vadd.f32 0.0, %v559
    %v561 = vpop.f32.mrb[0].mxu0
    %v562 = vadd.f32 0.0, %v561
    %563 = vdwg.mxu0
    %564 = vmatprep.subr.mxu0 %v416
    %565 = vmatpush1.msra.mxu0 %v415
    %566 = vmatprep.subr.mxu0 %v421
    %567 = vmatpush1.msra.mxu0 %v420
    %568 = vmatprep.subr.mxu0 %v426
    %569 = vmatpush1.msra.mxu0 %v425
    %570 = vmatprep.subr.mxu0 %v431
    %571 = vmatpush1.msra.mxu0 %v430
    %572 = vmatprep.subr.mxu0 %v436
    %573 = vmatpush1.msra.mxu0 %v435
    %574 = vmatprep.subr.mxu0 %v441
    %575 = vmatpush1.msra.mxu0 %v440
    %576 = vmatprep.subr.mxu0 %v446
    %577 = vmatpush1.msra.mxu0 %v445
    %578 = vmatprep.subr.mxu0 %v451
    %579 = vmatpush1.msra.mxu0 %v450
    %580 = vmatprep.subr.mxu0 %v456
    %581 = vmatpush1.msra.mxu0 %v455
    %582 = vmatprep.subr.mxu0 %v461
    %583 = vmatpush1.msra.mxu0 %v460
    %584 = vmatprep.subr.mxu0 %v466
    %585 = vmatpush1.msra.mxu0 %v465
    %586 = vmatprep.subr.mxu0 %v471
    %587 = vmatpush1.msra.mxu0 %v470
    %588 = vmatprep.subr.mxu0 %v476
    %589 = vmatpush1.msra.mxu0 %v475
    %590 = vmatprep.subr.mxu0 %v481
    %591 = vmatpush1.msra.mxu0 %v480
    %592 = vmatprep.subr.mxu0 %v486
    %593 = vmatpush1.msra.mxu0 %v485
    %594 = vmatprep.subr.mxu0 %v491
    %595 = vmatpush1.msra.mxu0 %v490
    %596 = vmatprep.subr.mxu0 0.0
    %597 = vmatpush1.msra.mxu0 0.0
    %598 = vmatprep.subr.mxu0 0.0
    %599 = vmatpush1.msra.mxu0 0.0
    %600 = vmatprep.subr.mxu0 0.0
    %601 = vmatpush1.msra.mxu0 0.0
    %602 = vmatprep.subr.mxu0 0.0
    %603 = vmatpush1.msra.mxu0 0.0
    %604 = vmatprep.subr.mxu0 0.0
    %605 = vmatpush1.msra.mxu0 0.0
    %606 = vmatprep.subr.mxu0 0.0
    %607 = vmatpush1.msra.mxu0 0.0
    %608 = vmatprep.subr.mxu0 0.0
    %609 = vmatpush1.msra.mxu0 0.0
    %610 = vmatprep.subr.mxu0 0.0
    %611 = vmatpush1.msra.mxu0 0.0
    %612 = vmatprep.subr.mxu0 0.0
    %613 = vmatpush1.msra.mxu0 0.0
    %614 = vmatprep.subr.mxu0 0.0
    %615 = vmatpush1.msra.mxu0 0.0
    %616 = vmatprep.subr.mxu0 0.0
    %617 = vmatpush1.msra.mxu0 0.0
    %618 = vmatprep.subr.mxu0 0.0
    %619 = vmatpush1.msra.mxu0 0.0
    %620 = vmatprep.subr.mxu0 0.0
    %621 = vmatpush1.msra.mxu0 0.0
    %622 = vmatprep.subr.mxu0 0.0
    %623 = vmatpush1.msra.mxu0 0.0
    %624 = vmatprep.subr.mxu0 0.0
    %625 = vmatpush1.msra.mxu0 0.0
    %626 = vmatprep.subr.mxu0 0.0
    %627 = vmatpush1.msra.mxu0 0.0
    %628 = vmatprep.mubr.f32.mxu0 0.0
    %629 = vmatmul.mubr.f32.gmra.mrb[0].mxu0 %v412
    %v630 = vpop.f32.mrb[0].mxu0
    %v631 = vadd.f32 0.0, %v630
    %v632 = vpop.f32.mrb[0].mxu0
    %v633 = vadd.f32 0.0, %v632
    %634 = vdwg.mxu0
    %635 = vmatprep.subr.mxu0 0.0
    %636 = vmatpush1.msra.mxu0 %v417
    %637 = vmatprep.subr.mxu0 0.0
    %638 = vmatpush1.msra.mxu0 %v422
    %639 = vmatprep.subr.mxu0 0.0
    %640 = vmatpush1.msra.mxu0 %v427
    %641 = vmatprep.subr.mxu0 0.0
    %642 = vmatpush1.msra.mxu0 %v432
    %643 = vmatprep.subr.mxu0 0.0
    %644 = vmatpush1.msra.mxu0 %v437
    %645 = vmatprep.subr.mxu0 0.0
    %646 = vmatpush1.msra.mxu0 %v442
    %647 = vmatprep.subr.mxu0 0.0
    %648 = vmatpush1.msra.mxu0 %v447
    %649 = vmatprep.subr.mxu0 0.0
    %650 = vmatpush1.msra.mxu0 %v452
    %651 = vmatprep.subr.mxu0 0.0
    %652 = vmatpush1.msra.mxu0 %v457
    %653 = vmatprep.subr.mxu0 0.0
    %654 = vmatpush1.msra.mxu0 %v462
    %655 = vmatprep.subr.mxu0 0.0
    %656 = vmatpush1.msra.mxu0 %v467
    %657 = vmatprep.subr.mxu0 0.0
    %658 = vmatpush1.msra.mxu0 %v472
    %659 = vmatprep.subr.mxu0 0.0
    %660 = vmatpush1.msra.mxu0 %v477
    %661 = vmatprep.subr.mxu0 0.0
    %662 = vmatpush1.msra.mxu0 %v482
    %663 = vmatprep.subr.mxu0 0.0
    %664 = vmatpush1.msra.mxu0 %v487
    %665 = vmatprep.subr.mxu0 0.0
    %666 = vmatpush1.msra.mxu0 %v492
    %667 = vmatprep.subr.mxu0 0.0
    %668 = vmatpush1.msra.mxu0 0.0
    %669 = vmatprep.subr.mxu0 0.0
    %670 = vmatpush1.msra.mxu0 0.0
    %671 = vmatprep.subr.mxu0 0.0
    %672 = vmatpush1.msra.mxu0 0.0
    %673 = vmatprep.subr.mxu0 0.0
    %674 = vmatpush1.msra.mxu0 0.0
    %675 = vmatprep.subr.mxu0 0.0
    %676 = vmatpush1.msra.mxu0 0.0
    %677 = vmatprep.subr.mxu0 0.0
    %678 = vmatpush1.msra.mxu0 0.0
    %679 = vmatprep.subr.mxu0 0.0
    %680 = vmatpush1.msra.mxu0 0.0
    %681 = vmatprep.subr.mxu0 0.0
    %682 = vmatpush1.msra.mxu0 0.0
    %683 = vmatprep.subr.mxu0 0.0
    %684 = vmatpush1.msra.mxu0 0.0
    %685 = vmatprep.subr.mxu0 0.0
    %686 = vmatpush1.msra.mxu0 0.0
    %687 = vmatprep.subr.mxu0 0.0
    %688 = vmatpush1.msra.mxu0 0.0
    %689 = vmatprep.subr.mxu0 0.0
    %690 = vmatpush1.msra.mxu0 0.0
    %691 = vmatprep.subr.mxu0 0.0
    %692 = vmatpush1.msra.mxu0 0.0
    %693 = vmatprep.subr.mxu0 0.0
    %694 = vmatpush1.msra.mxu0 0.0
    %695 = vmatprep.subr.mxu0 0.0
    %696 = vmatpush1.msra.mxu0 0.0
    %697 = vmatprep.subr.mxu0 0.0
    %698 = vmatpush1.msra.mxu0 0.0
    %699 = vmatprep.mubr.f32.mxu0 0.0
    %700 = vmatmul.mubr.f32.gmra.mrb[0].mxu0 %v412
    %v701 = vpop.f32.mrb[0].mxu0
    %v702 = vadd.f32 0.0, %v701
    %v703 = vpop.f32.mrb[0].mxu0
    %704 = vdwg.mxu0
    %v705 = vld [vmem:[#allocation5] sm:$0x1f]
    %v706 = vxor.u32 %v73, 2147483648
    %v707 = vxor.u32 %v74, 2147483648
    %v708 = vmul.f32 %v706, 1.442695
    %v709 = vpow.pop %v708
    %v710 = vmul.f32 %v707, 1.442695
    %v711 = vpow.pop %v710
    %v712 = vadd.f32 %v709, 1.0
    %v713 = vadd.f32 %v711, 1.0
    %v714 = vrcp.pop %v712
    %v715 = vmul.f32 1.0, %v714
    %v716 = vrcp.pop %v713
    %v717 = vmul.f32 1.0, %v716
    %v719 = vlaneseq
    %v720 = vshrl.u32 %v719, 7
    %v721 = vsub.s32 0, %v720
    %v722 = vrot.slane %v705, %v721
    %v723 = vlaneseq
    %v724 = vshrl.u32 %v723, 7
    %v725 = vsub.s32 1, %v724
    %v726 = vrot.slane %v705, %v725
    %v727 = vlaneseq
    %v728 = vshrl.u32 %v727, 7
    %v729 = vsub.s32 2, %v728
    %v730 = vrot.slane %v705, %v729
    %v731 = vlaneseq
    %v732 = vshrl.u32 %v731, 7
    %v733 = vsub.s32 3, %v732
    %v734 = vrot.slane %v705, %v733
    %v735 = vlaneseq
    %v736 = vshrl.u32 %v735, 7
    %v737 = vsub.s32 4, %v736
    %v738 = vrot.slane %v705, %v737
    %v746 = vcombine.high %v715, %v715
    %v748 = vunpack.c.l.s4 1983009808
    %v749 = vunpack.c.0.s8 %v748
    %v750 = vlaneseq
    %v751 = vshrl.u32 %v750, 7
    %v752 = vsub.s32 %v749, %v751
    %v753 = vrot.slane %v715, %v752
    %v755 = vunpack.c.l.s4 1983009808
    %v756 = vunpack.c.0.s8 %v755
    %v757 = vlaneseq
    %v758 = vshrl.u32 %v757, 7
    %v759 = vsub.s32 %v756, %v758
    %v760 = vrot.slane %v746, %v759
    %v761 = vcombine.high %v753, %v753
    %v762 = vcombine.high %v760, %v760
    %v764 = vunpack.c.l.s4 1983009808
    %v765 = vunpack.c.0.s8 %v764
    %v766 = vlaneseq
    %v767 = vshrl.u32 %v766, 7
    %v768 = vsub.s32 %v765, %v767
    %v769 = vrot.slane %v717, %v768
    %v775 = vmul.f32 %v722, %v753
    %v776 = vmul.f32 %v726, %v761
    %v777 = vmul.f32 %v730, %v760
    %v778 = vmul.f32 %v734, %v762
    %v779 = vmul.f32 %v738, %v769
    %v780 = vadd.f32 %v775, %v560
    %v781 = vadd.f32 %v776, %v562
    %v782 = vadd.f32 %v777, %v631
    %v783 = vadd.f32 %v778, %v633
    %v784 = vadd.f32 %v779, %v702
    %v790 = vcombine.low %v780, %v781
    %v791 = vcombine.low %v782, %v783
    %v793 = vunpack.c.l.s4 1983009808
    %v794 = vunpack.c.0.s8 %v793
    %v795 = vlaneseq
    %v796 = vshrl.u32 %v795, 7
    %v797 = vsub.s32 %v794, %v796
    %v798 = vrot.slane %v790, %v797
    %v800 = vunpack.c.l.s4 1983009808
    %v801 = vunpack.c.0.s8 %v800
    %v802 = vlaneseq
    %v803 = vshrl.u32 %v802, 7
    %v804 = vsub.s32 %v801, %v803
    %v805 = vrot.slane %v791, %v804
    %v806 = vcombine.low %v798, %v805
    %v808 = vunpack.c.l.s4 1983009808
    %v809 = vunpack.c.0.s8 %v808
    %v810 = vlaneseq
    %v811 = vshrl.u32 %v810, 7
    %v812 = vsub.s32 %v809, %v811
    %v813 = vrot.slane %v784, %v812
    %v816 = vmul.f32 %v73, %v806
    %v817 = vmul.f32 %v74, %v813
    %vm818 = vcmp.ne.f32.partialorder %v816, %v816
    %vm819 = vcmp.ne.f32.partialorder %v817, %v817
    %v820 = vsel %vm818, 0.0, %v816
    %v821 = vsel %vm819, 0.0, %v817
    %822 = vst [vmem:[#allocation10] sm:$0xff] %v820
    %823 = vst [vmem:[#allocation10 + $0x8] sm:$0x3] %v821
    // Predicated region
    $region34: #{tpu_custom_call.1} parent=1 // pred_check
      _
    $region35: #{tpu_custom_call.1} parent=1 // pred_check_branch
      %825 = sbr.rel (0) target = $region37
    $region36: #{tpu_custom_call.1} parent=1 // pred_region
      %s827 = ssub.s32 160, 160
      %828 = vsyncadd [#allocation4], %s827
      %s830 = sshll.u32 [#allocation10], 4
      %s831 = int_to_ptr.vmem [resolvable:$true] %s830
      %833 = dma.vmem_to_hbm [thread:$0]  %s831, 160, %s4, [#allocation4]
    $region37: #{tpu_custom_call.1} parent=1 // pred_fallthru
      _
    // Predicated region
    $region38: #{tpu_custom_call.1} parent=1 // pred_check
      _
    $region39: #{tpu_custom_call.1} parent=1 // pred_check_branch
      %835 = sbr.rel (0) target = $region41
    $region40: #{tpu_custom_call.1} parent=1 // pred_region
      %836 = dma.done [#allocation4], 160
    $region41: #{tpu_custom_call.1} parent=1 // pred_fallthru
      _
    %837 = vsyncpa [#allocation3], 1
    %838 = vsyncpa [#allocation6], 1
    %839 = vsyncpa [#allocation9], 1
    %840 = vsyncpa [#allocation4], 1

</llo_original>
